<compile_context>
chip_gen: v6e
topology: v6e:2x2x1
jax: 0.10.0
libtpu: 0.0.40
codegen_flags: <defaults>
</compile_context>

<pallas_src>
import numpy as np
import jax
import jax.numpy as jnp
from jax import lax
from jax.experimental import pallas as pl
from jax.experimental.pallas import tpu as pltpu


def _round_up(x, m):
    return ((x + m - 1) // m) * m


def _make_gather_kernel(block_t, n_valid):
    """Row-gather kernel: one DMA per valid token, HBM table row -> out block row."""

    def kernel(ids_ref, table_hbm, out_ref, sem):
        # ids_ref:   SMEM (n_pad,) int32      -- all token ids (scalar prefetch)
        # table_hbm: HBM  (vocab, hidden)     -- full table, never copied to VMEM
        # out_ref:   VMEM (block_t, hidden)   -- output block for this grid step
        # sem:       DMA semaphore (1,)
        vocab = table_hbm.shape[0]
        base = pl.program_id(0) * block_t
        # Number of real (non-padded) tokens in this block.
        n_here = jnp.minimum(block_t, n_valid - base)

        def issue(t, carry):
            # Clamp like jnp.take so out-of-range ids can't fault the DMA.
            row = jnp.clip(ids_ref[base + t], 0, vocab - 1)
            pltpu.make_async_copy(table_hbm.at[row], out_ref.at[t], sem.at[0]).start()
            return carry

        lax.fori_loop(0, n_here, issue, 0)

        def drain(t, carry):
            # Wait descriptor: same shapes as the issued copies.
            pltpu.make_async_copy(table_hbm.at[0], out_ref.at[t], sem.at[0]).wait()
            return carry

        lax.fori_loop(0, n_here, drain, 0)

    return kernel


def embed_lookup(ids_flat, table, *, block_t=512):
    """Embed a flat int token vector through `table` with a Pallas DMA row gather."""
    n = int(ids_flat.shape[0])
    vocab, hidden = table.shape
    itemsize = int(jnp.dtype(table.dtype).itemsize)

    # Token block: multiple of 8 rows (sublane-friendly), capped at block_t.
    bt = min(block_t, _round_up(max(n, 1), 8))
    n_blocks = pl.cdiv(n, bt)
    n_pad = n_blocks * bt
    ids_p = jnp.pad(ids_flat.astype(jnp.int32), (0, n_pad - n))

    out = pl.pallas_call(
        _make_gather_kernel(bt, n),
        out_shape=jax.ShapeDtypeStruct((n_pad, hidden), table.dtype),
        grid_spec=pltpu.PrefetchScalarGridSpec(
            num_scalar_prefetch=1,                          # ids -> SMEM
            grid=(n_blocks,),
            in_specs=[pl.BlockSpec(memory_space=pl.ANY)],   # table stays in HBM
            out_specs=pl.BlockSpec((bt, hidden), lambda i, ids: (i, 0)),
            scratch_shapes=[pltpu.SemaphoreType.DMA((1,))],
        ),
        compiler_params=pltpu.CompilerParams(
            dimension_semantics=("parallel",),
            # Only the double-buffered output block lives in VMEM now.
            vmem_limit_bytes=min(64 << 20, max(8 << 20, 4 * bt * hidden * itemsize)),
        ),
    )(ids_p, table)
    return out[:n]


class TokenEmbedder:
    """JAX/Pallas port of the PyTorch TokenEmbedder module."""

    def __init__(self, hidden_size, vocab_size=32768, dtype=jnp.float32,
                 key=jax.random.PRNGKey(42)):
        self.hidden_size = hidden_size
        self.vocab_size = vocab_size
        self.dtype = dtype
        # Deterministic parameter init (matches the module's init choice):
        if hidden_size <= 768:
            # normal(stddev=0.02)
            emb = 0.02 * jax.random.normal(key, (vocab_size, hidden_size))
        else:
            # xavier_uniform over (fan_in=vocab, fan_out=hidden)
            limit = float(np.sqrt(6.0 / (vocab_size + hidden_size)))
            emb = jax.random.uniform(key, (vocab_size, hidden_size),
                                     minval=-limit, maxval=limit)
        self.embedding = emb.astype(dtype)

    def __call__(self, token_dict):
        keys = sorted(token_dict.keys())
        shapes = [token_dict[k].shape for k in keys]
        n_elems = [int(np.prod(s)) for s in shapes]
        x_flat = jnp.concatenate([token_dict[k].reshape(-1) for k in keys], 0)
        embedded = embed_lookup(x_flat, self.embedding)      # hot path in Pallas
        embed_split = jnp.split(embedded, np.cumsum(n_elems)[:-1], axis=0)
        out_dict = {}
        for k_i, s_i, v_i in zip(keys, shapes, embed_split):
            out_dict[k_i] = v_i.reshape(list(s_i) + [self.hidden_size])
        return out_dict


if __name__ == "__main__":
    hidden_size = 128
    vocab_size = 512

    root = jax.random.PRNGKey(0)
    k_param, k_a, k_b = jax.random.split(root, 3)

    embedder = TokenEmbedder(hidden_size, vocab_size=vocab_size, key=k_param)

    token_dict = {
        "text_tokens": jax.random.randint(k_a, (2, 8), 0, vocab_size, jnp.int32),
        "image_tokens": jax.random.randint(k_b, (2, 4, 4), 0, vocab_size, jnp.int32),
    }

    out = embedder(token_dict)
    out = jax.tree_util.tree_map(jax.block_until_ready, out)

    # Correctness check against a plain-JAX embedding lookup (gather is exact).
    for k in token_dict:
        ref = jnp.take(embedder.embedding, token_dict[k], axis=0)
        assert out[k].shape == tuple(token_dict[k].shape) + (hidden_size,)
        assert out[k].dtype == embedder.embedding.dtype
        np.testing.assert_array_equal(np.asarray(out[k]), np.asarray(ref))

    print("KERNEL_OK")
</pallas_src>

<mosaic_0001>
module attributes {stable_mosaic.version = 11 : i64} {
  func.func @kernel(%arg0: i32, %arg1: memref<48xi32, #tpu.memory_space<smem>>, %arg2: memref<512x128xf32, #tpu.memory_space<any>>, %arg3: memref<48x128xf32, #tpu.memory_space<vmem>>, %arg4: memref<1x!tpu.dma_semaphore, #tpu.memory_space<semaphore_mem>>) attributes {dimension_semantics = [#tpu.dimension_semantics<parallel>], iteration_bounds = array<i64: 1>, scalar_prefetch = 1 : i64, scratch_operands = 1 : i64, tpu.core_type = #tpu.core_type<tc>, window_params = [{}, {transform_indices = @transform_1, window_bounds = array<i64: 48, 128>}]} {
    %c48_i32 = arith.constant 48 : i32
    %0 = arith.muli %arg0, %c48_i32 : i32
    %c48_i32_0 = arith.constant 48 : i32
    %1 = arith.subi %c48_i32_0, %0 : i32
    %c48_i32_1 = arith.constant 48 : i32
    %2 = arith.minsi %c48_i32_1, %1 : i32
    %c0_i32 = arith.constant 0 : i32
    %c0_i32_2 = arith.constant 0 : i32
    %3 = arith.subi %2, %c0_i32_2 : i32
    %4 = arith.addi %c0_i32_2, %3 : i32
    %c1_i32 = arith.constant 1 : i32
    scf.for %arg5 = %c0_i32_2 to %4 step %c1_i32  : i32 {
      %7 = arith.addi %0, %arg5 : i32
      %8 = arith.index_cast %7 : i32 to index
      %9 = memref.load %arg1[%8] : memref<48xi32, #tpu.memory_space<smem>>
      %c0_i32_6 = arith.constant 0 : i32
      %c511_i32 = arith.constant 511 : i32
      %10 = arith.maxsi %c0_i32_6, %9 : i32
      %11 = arith.minsi %c511_i32, %10 : i32
      %c0_i32_7 = arith.constant 0 : i32
      %c0_i32_8 = arith.constant 0 : i32
      %12 = tpu.memref_slice %arg2[%11, %c0_i32_8] : memref<512x128xf32, #tpu.memory_space<any>> -> memref<1x128xf32, #tpu.memory_space<any>>
      %13 = tpu.memref_squeeze %12 : memref<1x128xf32, #tpu.memory_space<any>> -> memref<128xf32, #tpu.memory_space<any>>
      %c0_i32_9 = arith.constant 0 : i32
      %14 = tpu.memref_slice %arg3[%arg5, %c0_i32_9] : memref<48x128xf32, #tpu.memory_space<vmem>> -> memref<1x128xf32, #tpu.memory_space<vmem>>
      %15 = tpu.memref_squeeze %14 : memref<1x128xf32, #tpu.memory_space<vmem>> -> memref<128xf32, #tpu.memory_space<vmem>>
      %16 = tpu.memref_slice %arg4[%c0_i32_7] : memref<1x!tpu.dma_semaphore, #tpu.memory_space<semaphore_mem>> -> memref<1x!tpu.dma_semaphore, #tpu.memory_space<semaphore_mem>>
      %17 = tpu.memref_squeeze %16 : memref<1x!tpu.dma_semaphore, #tpu.memory_space<semaphore_mem>> -> memref<!tpu.dma_semaphore, #tpu.memory_space<semaphore_mem>>
      tpu.enqueue_dma source(%13 : memref<128xf32, #tpu.memory_space<any>>) target(%15 : memref<128xf32, #tpu.memory_space<vmem>>) target_semaphore(%17 : memref<!tpu.dma_semaphore, #tpu.memory_space<semaphore_mem>>)
    }
    %c0_i32_3 = arith.constant 0 : i32
    %c0_i32_4 = arith.constant 0 : i32
    %5 = arith.subi %2, %c0_i32_4 : i32
    %6 = arith.addi %c0_i32_4, %5 : i32
    %c1_i32_5 = arith.constant 1 : i32
    scf.for %arg5 = %c0_i32_4 to %6 step %c1_i32_5  : i32 {
      %c0_i32_6 = arith.constant 0 : i32
      %c0_i32_7 = arith.constant 0 : i32
      %c0_i32_8 = arith.constant 0 : i32
      %7 = tpu.memref_slice %arg2[%c0_i32_6, %c0_i32_8] : memref<512x128xf32, #tpu.memory_space<any>> -> memref<1x128xf32, #tpu.memory_space<any>>
      %8 = tpu.memref_squeeze %7 : memref<1x128xf32, #tpu.memory_space<any>> -> memref<128xf32, #tpu.memory_space<any>>
      %c0_i32_9 = arith.constant 0 : i32
      %9 = tpu.memref_slice %arg3[%arg5, %c0_i32_9] : memref<48x128xf32, #tpu.memory_space<vmem>> -> memref<1x128xf32, #tpu.memory_space<vmem>>
      %10 = tpu.memref_squeeze %9 : memref<1x128xf32, #tpu.memory_space<vmem>> -> memref<128xf32, #tpu.memory_space<vmem>>
      %11 = tpu.memref_slice %arg4[%c0_i32_7] : memref<1x!tpu.dma_semaphore, #tpu.memory_space<semaphore_mem>> -> memref<1x!tpu.dma_semaphore, #tpu.memory_space<semaphore_mem>>
      %12 = tpu.memref_squeeze %11 : memref<1x!tpu.dma_semaphore, #tpu.memory_space<semaphore_mem>> -> memref<!tpu.dma_semaphore, #tpu.memory_space<semaphore_mem>>
      tpu.wait_dma2 semaphore(%12 : memref<!tpu.dma_semaphore, #tpu.memory_space<semaphore_mem>>) src(%8 : memref<128xf32, #tpu.memory_space<any>>) dst(%10 : memref<128xf32, #tpu.memory_space<vmem>>)
    }
    return
  }
  func.func @transform_1(%arg0: i32, %arg1: memref<48xi32, #tpu.memory_space<smem>>) -> (i32, i32) {
    %c0_i32 = arith.constant 0 : i32
    %c0_i32_0 = arith.constant 0 : i32
    return %arg0, %c0_i32 : i32, i32
  }
}

</mosaic_0001>

<llo_original>
// kernel: tpu_custom_call.1
$region0: #{tpu_custom_call.1}
  #allocation0 [shape = 'u32[]', space=smem, size = 0x4, offset = 0x4, fixed_abs, tag = 'smem constant byte address 0x4 - core index']
  #allocation1 [shape = 'u32[144,128]{1,0:T(1,128)}', space=vmem, size = 0x12000, scoped, tag = 'internal scratch']
  #allocation2 [shape = 's32[1]{0}', space=sflag, size = 0x4, scoped, tag = 'scratch operand']
  #allocation3 [shape = 's32[1]{0}', space=sflag, size = 0x4, scoped, tag = 'scoped memory for tpu_custom_call.1']
  #allocation4 [shape = 'u8[512]{0}', space=smem, size = 0x200, scoped, tag = 'prefetched SMEM operand 0']
  #allocation7 [shape = 's32[]', space=sflag, size = 0x4, offset = 0, fixed_abs, tag = 'sflag constant byte address 0x0 - dummy sync flag']
  #allocation8 [shape = 's32[]', space=sflag, size = 0x4, offset = 0, fixed_abs, tag = 'sflag constant byte address 0x0 - dummy sync flag']
  #allocation9 [shape = 'u32[]', space=smem, size = 0x4, offset = 0x44, fixed_abs, tag = 'smem constant byte address 0x44 - assertion arg 0']
  #allocation10 [shape = 'u32[]', space=smem, size = 0x4, offset = 0x48, fixed_abs, tag = 'smem constant byte address 0x48 - assertion arg 1']
  %s0 = inlined_call_operand.hbm [shape: s32[48], index: 0, kind: input, shape index: {}]
  %s1 = inlined_call_operand.hbm [shape: f32[512,128], index: 1, kind: input, shape index: {}]
  %s2 = inlined_call_operand.hbm [shape: f32[48,128], index: 2, kind: output, shape index: {}]
  %s3 = sld [smem:[#allocation0]]
  $region28: #{tpu_custom_call.1} parent=0
    _
  %s5 = ssub.s32 1, %s3
  %s6 = scalar_select 0, %s5, %s3
  %8 = dma.hbm_to_smem %s0, 16, [#allocation4], [#allocation3]
  %9 = dma.done [#allocation3], 16
  %10 = sfence
  $region1: #{tpu_custom_call.1} parent=0
    #allocation5 [shape = 'u8[24576]{0}', space=vmem, size = 0x6000, scoped, tag = 'output window, operand 0, single buffered']
    #allocation6 [shape = 's32[1]{0}', space=sflag, size = 0x4, scoped, tag = 'scoped memory for tpu_custom_call.1']
    %11 = vsyncpa [#allocation6], 0
    %s12 = smul.u32 0, 48
    %s13 = ssub.s32 48, %s12
    %p14 = scmp.lt.s32.totalorder %s13, 48
    %s15 = scalar_select %p14, %s13, 48
    // While loop
    $region2: #{tpu_custom_call.1} parent=1 // loop_pre_header
      _
    $region3: #{tpu_custom_call.1} parent=1 // loop_header
      %s17 = sphi 0, %s19
      %p18 = scmp.ge.s32.totalorder %s17, %s15
    $region4: #{tpu_custom_call.1} parent=1 // loop_header_branch
      %21 = sbr.rel (%p18) target = $region8
    $region5: #{tpu_custom_call.1} parent=1 // loop_body
      %s22 = sadd.s32 %s12, %s17
      %s23 = sld [smem:[#allocation4 + %s22]]
      %p24 = scmp.gt.s32.totalorder %s23, 0
      %s25 = scalar_select %p24, %s23, 0
      %p26 = scmp.lt.s32.totalorder %s25, 511
      %s27 = scalar_select %p26, %s25, 511
      %s28 = smul.addr %s27, 16
      %s29 = scalar_lea.hbm %s1, %s28
      %s30 = scalar_lea.vmem [#allocation5], %s17
      // Predicated region
      $region9: #{tpu_custom_call.1} parent=5 // pred_check
        _
      $region10: #{tpu_custom_call.1} parent=5 // pred_check_branch
        %32 = sbr.rel target = $region12
      $region11: #{tpu_custom_call.1} parent=5 // pred_region
        %33 = sst [smem:[#allocation9]] [#allocation8]
        %34 = sst [smem:[#allocation10]] [#allocation7]
      $region12: #{tpu_custom_call.1} parent=5 // pred_fallthru
        _
      %36 = shalt.err (0)
      %s38 = sshll.u32 %s30, 4
      %s39 = int_to_ptr.vmem [resolvable:$true] %s38
      %41 = dma.hbm_to_vmem [thread:$0]  %s29, 16, %s39, [#allocation2]
    $region6: #{tpu_custom_call.1} parent=1 // loop_footer
      %s19 = sadd.s32 %s17, 1
    $region7: #{tpu_custom_call.1} parent=1 // loop_footer_branch
      %16 = sbr.rel target = $region3
    $region8: #{tpu_custom_call.1} parent=1 // loop_exit
      _
    // While loop
    $region13: #{tpu_custom_call.1} parent=1 // loop_pre_header
      _
    $region14: #{tpu_custom_call.1} parent=1 // loop_header
      %s43 = sphi 0, %s45
      %p44 = scmp.ge.s32.totalorder %s43, %s15
    $region15: #{tpu_custom_call.1} parent=1 // loop_header_branch
      %47 = sbr.rel (%p44) target = $region19
    $region16: #{tpu_custom_call.1} parent=1 // loop_body
      %49 = dma.done [#allocation2], 16
    $region17: #{tpu_custom_call.1} parent=1 // loop_footer
      %s45 = sadd.s32 %s43, 1
    $region18: #{tpu_custom_call.1} parent=1 // loop_footer_branch
      %42 = sbr.rel target = $region14
    $region19: #{tpu_custom_call.1} parent=1 // loop_exit
      _
    // Predicated region
    $region20: #{tpu_custom_call.1} parent=1 // pred_check
      _
    $region21: #{tpu_custom_call.1} parent=1 // pred_check_branch
      %51 = sbr.rel (0) target = $region23
    $region22: #{tpu_custom_call.1} parent=1 // pred_region
      %s53 = ssub.s32 768, 768
      %54 = vsyncadd [#allocation6], %s53
      %s55 = sshll.u32 [#allocation5], 4
      %s56 = int_to_ptr.vmem [resolvable:$true] %s55
      %61 = dma.vmem_to_hbm [thread:$0]  %s56, 768, %s2, [#allocation6], 128, 128, 8
    $region23: #{tpu_custom_call.1} parent=1 // pred_fallthru
      _
    // Predicated region
    $region24: #{tpu_custom_call.1} parent=1 // pred_check
      _
    $region25: #{tpu_custom_call.1} parent=1 // pred_check_branch
      %63 = sbr.rel (0) target = $region27
    $region26: #{tpu_custom_call.1} parent=1 // pred_region
      %64 = dma.done [#allocation6], 768
    $region27: #{tpu_custom_call.1} parent=1 // pred_fallthru
      _
    %65 = vsyncpa [#allocation6], 1
  %66 = vsyncmov [#allocation2]
  %s67 = vpop.sfrf %66
  %p68 = scmp.eq.s32.totalorder %s67, 0
  %p69 = pneg %p68
  %71 = shalt.err (%p69)

</llo_original>
